<compile_context>
chip_gen: v6e
topology: v6e:2x2x1
jax: 0.10.0
libtpu: 0.0.40
codegen_flags: <defaults>
</compile_context>

<pallas_src>
import jax
import jax.numpy as jnp
from jax.experimental import pallas as pl
from jax.experimental.pallas import tpu as pltpu

BN_EPS = 1e-5


def _round_up(x, m):
    return ((x + m - 1) // m) * m


def _pick_tm(m128, cap):
    """Largest multiple of 128 that divides m128 and is <= cap (>= 128)."""
    q = m128 // 128
    d = max(1, min(cap // 128, q))
    while q % d != 0:
        d -= 1
    return 128 * d


# ----------------------------------------------------------------------------
# Pallas kernel: fused (concat -> 1x1 conv (BN-folded) -> +bias -> ReLU)
#   x3_ref  : (c3,  tm)   C3 channel group           (pixels on the lane axis)
#   x45_ref : (c45, tm)   [C4_up | C5_up | ones | 0] channel group
#   w_ref   : (Cout, c3+c45) folded weight (+ bias column + zero columns)
#   o_ref   : (Cout, tm)
# Both channel groups are sublane-tile aligned (16 rows), so the concat is
# just vreg bookkeeping; a single K=(c3+c45) MXU dot does conv + bias.
# ----------------------------------------------------------------------------
def _fused_neck_kernel(x3_ref, x45_ref, w_ref, o_ref):
    x = jnp.concatenate([x3_ref[...], x45_ref[...]], axis=0)
    acc = jnp.dot(w_ref[...], x, preferred_element_type=jnp.float32)
    o_ref[...] = jnp.maximum(acc, 0.0).astype(o_ref.dtype)


def fused_neck_conv(x3, x45, w_packed, *, tm_cap=4096, out_dtype=jnp.bfloat16):
    """x3: (B, c3, M); x45: (B, c45, M); w_packed: (Cout, c3+c45) -> (B, Cout, M)."""
    B, c3, M = x3.shape
    c45 = x45.shape[1]
    Cout, k_pad = w_packed.shape
    assert k_pad == c3 + c45
    cdt = x3.dtype

    m128 = _round_up(M, 128)
    if m128 != M:
        # TODO(synk): rare ragged case (M % 128 != 0) costs one extra pad pass;
        # could be replaced by an in-kernel lane mask on the last tile.
        pad = ((0, 0), (0, 0), (0, m128 - M))
        x3 = jnp.pad(x3, pad)
        x45 = jnp.pad(x45, pad)

    cap = min(tm_cap, m128)
    if B == 1 and m128 >= 256:
        cap = min(cap, m128 // 2)        # v7x megacore: keep >= 2 grid blocks
    tm = _pick_tm(m128, cap)             # divides m128 -> no pad/slice on tiles
    grid = (B, m128 // tm)

    in_bytes = jnp.dtype(cdt).itemsize
    out_bytes = jnp.dtype(out_dtype).itemsize
    cost = pl.CostEstimate(
        flops=2 * B * m128 * k_pad * Cout,
        transcendentals=0,
        bytes_accessed=(B * m128 * k_pad + Cout * k_pad) * in_bytes
        + B * m128 * Cout * out_bytes,
    )

    y = pl.pallas_call(
        _fused_neck_kernel,
        out_shape=jax.ShapeDtypeStruct((B, Cout, m128), out_dtype),
        grid_spec=pltpu.PrefetchScalarGridSpec(
            num_scalar_prefetch=0,
            grid=grid,
            in_specs=[
                pl.BlockSpec((None, c3, tm), lambda b, j: (b, 0, j)),
                pl.BlockSpec((None, c45, tm), lambda b, j: (b, 0, j)),
                pl.BlockSpec((Cout, k_pad), lambda b, j: (0, 0)),
            ],
            out_specs=pl.BlockSpec((None, Cout, tm), lambda b, j: (b, 0, j)),
        ),
        compiler_params=pltpu.CompilerParams(
            dimension_semantics=("parallel", "parallel")),
        cost_estimate=cost,
    )(x3, x45, w_packed)

    if m128 != M:
        y = y[:, :, :M]
    return y


# ----------------------------------------------------------------------------
# Glue (plain JAX): pixel-shuffle upsample, BN folding / weight packing
# ----------------------------------------------------------------------------
def my_upsample(x, r):
    """Exact replica of my_upsample.forward (pixel shuffle), NCHW."""
    b, c, h, w = x.shape
    x = x.reshape(b, c // (r * r), r, r, h, w)
    x = x.transpose(0, 1, 4, 2, 5, 3)          # (b, c', h, r, w, r)
    return x.reshape(b, c // (r * r), h * r, w * r)


def fold_bn_pack(params, k_pad):
    """Fold BN into the 1x1 conv: returns (Cout, k_pad) f32 packed weight.

    Columns: [w_folded (Cin) | bias (1) | zeros (k_pad - Cin - 1)].
    params['w'] is the matmul-form conv weight (Cin, Cout).
    """
    scale = params["gamma"] * jax.lax.rsqrt(params["var"] + BN_EPS)   # (Cout,)
    wT = (params["w"] * scale[None, :]).T                             # (Cout, Cin)
    bias = (params["beta"] - params["mean"] * scale).reshape(-1, 1)   # (Cout, 1)
    Cout, Cin = wT.shape
    zeros = jnp.zeros((Cout, k_pad - Cin - 1), jnp.float32)
    return jnp.concatenate([wT, bias, zeros], axis=1).astype(jnp.float32)


def neck_forward(C3, C4, C5, params, *, tm_cap=4096,
                 compute_dtype=jnp.bfloat16, out_dtype=jnp.bfloat16):
    """Inputs NCHW; output NCHW (B, 256, H3, W3)."""
    B, c3, H, W = C3.shape
    # Cast before the pixel-shuffle so its HBM transpose pass runs at half width.
    C3 = C3.astype(compute_dtype)
    C4 = C4.astype(compute_dtype)
    C5 = C5.astype(compute_dtype)
    C4u = my_upsample(C4, 2)
    C5u = my_upsample(C5, 4)
    c4q, c5q = C4u.shape[1], C5u.shape[1]
    M = H * W

    # NCHW -> (B, C, H*W): pure reshapes, no transpose passes.
    x3 = C3.reshape(B, c3, M)
    k_used = c3 + c4q + c5q + 1                    # +1 bias (ones) channel
    k_pad = _round_up(k_used, 8)
    n_zero = k_pad - k_used
    # Channel group 2 = [C4_up | C5_up | ones | zero-pad]; typically fused by
    # XLA with the pixel-shuffle transposes.  (c3 = 16 keeps the in-kernel
    # concat boundary sublane-tile aligned for both f32 and bf16.)
    x45 = jnp.concatenate(
        [C4u.reshape(B, c4q, M),
         C5u.reshape(B, c5q, M),
         jnp.ones((B, 1, M), compute_dtype),
         jnp.zeros((B, n_zero, M), compute_dtype)], axis=1)

    w_packed = fold_bn_pack(params, k_pad).astype(compute_dtype)   # (Cout, k_pad)
    y = fused_neck_conv(x3, x45, w_packed, tm_cap=tm_cap, out_dtype=out_dtype)
    Cout = w_packed.shape[0]
    return y.reshape(B, Cout, H, W)


def reference_forward(C3, C4, C5, params):
    """Pure-JAX f32 reference for correctness checking."""
    C5u = my_upsample(C5, 4)
    C4u = my_upsample(C4, 2)
    x = jnp.concatenate((C3, C4u, C5u), axis=1)
    y = jnp.einsum("bchw,co->bohw", x, params["w"])
    scale = params["gamma"] / jnp.sqrt(params["var"] + BN_EPS)
    shift = params["beta"] - params["mean"] * scale
    y = y * scale[None, :, None, None] + shift[None, :, None, None]
    return jnp.maximum(y, 0.0)


# ----------------------------------------------------------------------------
# Main
# ----------------------------------------------------------------------------
if __name__ == "__main__":
    key = jax.random.PRNGKey(0)
    k = jax.random.split(key, 8)

    # Small shapes consistent with the module:
    #   input_channel = [16, 32, 64]  (C3, C4, C5 channels)
    #   C5 % 16 == 0 (upsample x4), C4 % 4 == 0 (upsample x2)
    B = 2
    c3, c4, c5 = 16, 32, 64
    H3, W3 = 16, 16
    C3 = jax.random.normal(k[0], (B, c3, H3, W3), dtype=jnp.float32)
    C4 = jax.random.normal(k[1], (B, c4, H3 // 2, W3 // 2), dtype=jnp.float32)
    C5 = jax.random.normal(k[2], (B, c5, H3 // 4, W3 // 4), dtype=jnp.float32)

    d8 = c5 // 16 + c4 // 4 + c3        # = 4 + 8 + 16 = 28
    Cout = 256

    # Deterministic synthetic parameters (conv weight + BN params/stats).
    params = {
        # PyTorch conv weight is (Cout, Cin, 1, 1); matmul form is (Cin, Cout).
        "w": 0.05 * jax.random.normal(k[3], (d8, Cout), dtype=jnp.float32),
        "gamma": 0.5 + jax.random.uniform(k[4], (Cout,), dtype=jnp.float32),
        "beta": 0.1 * jax.random.normal(k[5], (Cout,), dtype=jnp.float32),
        "mean": 0.1 * jax.random.normal(k[6], (Cout,), dtype=jnp.float32),
        "var": 0.5 + jax.random.uniform(k[7], (Cout,), dtype=jnp.float32),
    }

    ref = jax.block_until_ready(reference_forward(C3, C4, C5, params))

    # f32 path: tight numerical check against the reference.
    out_f32 = jax.block_until_ready(
        neck_forward(C3, C4, C5, params,
                     compute_dtype=jnp.float32, out_dtype=jnp.float32))
    assert out_f32.shape == (B, Cout, H3, W3), out_f32.shape
    assert jnp.allclose(out_f32, ref, atol=5e-4, rtol=5e-4), \
        float(jnp.max(jnp.abs(out_f32 - ref)))

    # bf16 path (performance default): loosened tolerance.
    out_bf16 = jax.block_until_ready(neck_forward(C3, C4, C5, params))
    assert out_bf16.shape == (B, Cout, H3, W3), out_bf16.shape
    out_bf16_f32 = out_bf16.astype(jnp.float32)
    assert jnp.allclose(out_bf16_f32, ref, atol=7.5e-2, rtol=7.5e-2), \
        float(jnp.max(jnp.abs(out_bf16_f32 - ref)))

    print("KERNEL_OK")
</pallas_src>

<mosaic_0001>
module attributes {stable_mosaic.version = 11 : i64} {
  func.func @_fused_neck_kernel(%arg0: i32, %arg1: i32, %arg2: memref<1x16x256xf32, #tpu.memory_space<vmem>>, %arg3: memref<1x16x256xf32, #tpu.memory_space<vmem>>, %arg4: memref<256x32xf32, #tpu.memory_space<vmem>>, %arg5: memref<1x256x256xf32, #tpu.memory_space<vmem>>) attributes {dimension_semantics = [#tpu.dimension_semantics<parallel>, #tpu.dimension_semantics<parallel>], iteration_bounds = array<i64: 2, 1>, scalar_prefetch = 0 : i64, scratch_operands = 0 : i64, tpu.core_type = #tpu.core_type<tc>, window_params = [{transform_indices = @transform_0, window_bounds = array<i64: 1, 16, 256>}, {transform_indices = @transform_1, window_bounds = array<i64: 1, 16, 256>}, {pipeline_mode = #tpu.pipeline_mode<synchronous>, transform_indices = @transform_2, window_bounds = array<i64: 256, 32>}, {transform_indices = @transform_3, window_bounds = array<i64: 1, 256, 256>}]} {
    %c0 = arith.constant 0 : index
    %c0_0 = arith.constant 0 : index
    %c0_1 = arith.constant 0 : index
    %0 = vector.load %arg2[%c0, %c0_0, %c0_1] : memref<1x16x256xf32, #tpu.memory_space<vmem>>, vector<1x16x256xf32>
    %1 = vector.shape_cast %0 : vector<1x16x256xf32> to vector<16x256xf32>
    %c0_2 = arith.constant 0 : index
    %c0_3 = arith.constant 0 : index
    %c0_4 = arith.constant 0 : index
    %2 = vector.load %arg3[%c0_2, %c0_3, %c0_4] : memref<1x16x256xf32, #tpu.memory_space<vmem>>, vector<1x16x256xf32>
    %3 = vector.shape_cast %2 : vector<1x16x256xf32> to vector<16x256xf32>
    %4 = tpu.concatenate %1, %3 in 0 : vector<16x256xf32>, vector<16x256xf32> -> vector<32x256xf32>
    %c0_5 = arith.constant 0 : index
    %c0_6 = arith.constant 0 : index
    %5 = vector.load %arg4[%c0_5, %c0_6] : memref<256x32xf32, #tpu.memory_space<vmem>>, vector<256x32xf32>
    %cst = arith.constant dense<0.000000e+00> : vector<256x256xf32>
    %6 = tpu.matmul %5, %4, %cst {dimension_numbers = #tpu.dot_dimension_numbers<[1], [0], [0], [1], [0, 0, 1, 1], [], []>} : vector<256x32xf32>, vector<32x256xf32>, vector<256x256xf32> -> vector<256x256xf32>
    %cst_7 = arith.constant 0.000000e+00 : f32
    %7 = vector.broadcast %cst_7 : f32 to vector<256x256xf32>
    %8 = arith.maximumf %6, %7 : vector<256x256xf32>
    %c0_8 = arith.constant 0 : index
    %c0_9 = arith.constant 0 : index
    %c0_10 = arith.constant 0 : index
    %9 = vector.load %arg5[%c0_8, %c0_9, %c0_10] : memref<1x256x256xf32, #tpu.memory_space<vmem>>, vector<1x256x256xf32>
    %10 = vector.shape_cast %9 : vector<1x256x256xf32> to vector<256x256xf32>
    %11 = vector.shape_cast %8 : vector<256x256xf32> to vector<1x256x256xf32>
    tpu.vector_store %arg5[%c0_8, %c0_9, %c0_10], %11 {strides = array<i32>} : memref<1x256x256xf32, #tpu.memory_space<vmem>>, vector<1x256x256xf32>,
    return
  }
  func.func @transform_0(%arg0: i32, %arg1: i32) -> (i32, i32, i32) {
    %c0_i32 = arith.constant 0 : i32
    %c0_i32_0 = arith.constant 0 : i32
    return %arg0, %c0_i32, %arg1 : i32, i32, i32
  }
  func.func @transform_1(%arg0: i32, %arg1: i32) -> (i32, i32, i32) {
    %c0_i32 = arith.constant 0 : i32
    %c0_i32_0 = arith.constant 0 : i32
    return %arg0, %c0_i32, %arg1 : i32, i32, i32
  }
  func.func @transform_2(%arg0: i32, %arg1: i32) -> (i32, i32) {
    %c0_i32 = arith.constant 0 : i32
    %c0_i32_0 = arith.constant 0 : i32
    %c0_i32_1 = arith.constant 0 : i32
    return %c0_i32, %c0_i32_0 : i32, i32
  }
  func.func @transform_3(%arg0: i32, %arg1: i32) -> (i32, i32, i32) {
    %c0_i32 = arith.constant 0 : i32
    %c0_i32_0 = arith.constant 0 : i32
    return %arg0, %c0_i32, %arg1 : i32, i32, i32
  }
}

</mosaic_0001>

<llo_original>
// kernel: tpu_custom_call.1
$region0: #{tpu_custom_call.1}
  #allocation0 [shape = 'u32[]', space=smem, size = 0x4, offset = 0x4, fixed_abs, tag = 'smem constant byte address 0x4 - core index']
  #allocation1 [shape = 'u32[144,128]{1,0:T(1,128)}', space=vmem, size = 0x12000, scoped, tag = 'internal scratch']
  %s0 = inlined_call_operand.vmem [shape: f32[2,16,256], index: 0, kind: input, shape index: {}]
  %s1 = inlined_call_operand.vmem [shape: f32[2,16,256], index: 1, kind: input, shape index: {}]
  %s2 = inlined_call_operand.vmem [shape: f32[256,32], index: 2, kind: input, shape index: {}]
  %s3 = inlined_call_operand.hbm [shape: f32[2,256,256], index: 3, kind: output, shape index: {}]
  %s4 = sld [smem:[#allocation0]]
  $region45: #{tpu_custom_call.1} parent=0
    _
  %s6 = ssub.s32 1, %s4
  %s7 = scalar_select 0, %s6, %s4
  $region1: #{tpu_custom_call.1} parent=0
    #allocation2 [shape = 'u8[524288]{0}', space=vmem, size = 0x80000, scoped, tag = 'output window, operand 0']
    #allocation3 [shape = 's32[2]{0}', space=sflag, size = 0x8, scoped, tag = 'scoped memory for tpu_custom_call.1']
    %8 = vsyncpa [#allocation3], 0
    %s9 = scalar_lea.sflag [#allocation3], 1
    %10 = vsyncpa %s9, 0
    loop: start=0, step=1, limit=4
    $region2: #{tpu_custom_call.1} parent=1 // loop_pre_header
      _
    $region3: #{tpu_custom_call.1} parent=1 // loop_header
      %s12 = sphi 0, %s16
      %p13 = scmp.ge.s32.totalorder %s12, 4
      %s19 = sphi 0, %s31
      %s20 = sphi 0, %s27
      %s21 = sphi 0, %s19
      %s22 = sphi 0, %s20
      %s23 = sphi 0, %s21
      %s24 = sphi 0, %s22
      %s36 = sphi 0, %s38
      %s39 = sphi 0, %s36
      %s40 = sphi 0, %s39
      %s56 = sphi 0, %s40
      %s64 = sphi 0, %s66
      %s67 = sphi 0, %s64
      %s68 = sphi 0, %s67
      %s84 = sphi 0, %s68
      %s88 = sphi 0, %s88
      %s90 = sphi 0, %s88
      %s91 = sphi 0, %s90
      %s105 = sphi 0, %s91
      %s113 = sphi 0, %s115
      %s116 = sphi 0, %s113
      %s117 = sphi 0, %s116
      %s133 = sphi 0, %s117
    $region4: #{tpu_custom_call.1} parent=1 // loop_header_branch
      %15 = sbr.rel (%p13) target = $region8
    $region5: #{tpu_custom_call.1} parent=1 // loop_body
      %s17 = ssub.s32 %s12, 1
      %s18 = ssub.s32 %s12, 2
      %s25 = sadd.s32 1, %s20
      %p26 = scmp.ge.s32.totalorder %s25, 1
      %s27 = scalar_select %p26, 0, %s25
      %s28 = sadd.s32 1, %s19
      %s29 = scalar_select %p26, %s28, %s19
      %p30 = scmp.ge.s32.totalorder %s29, 2
      %s31 = scalar_select %p30, 0, %s29
      %s32 = ssub.s32 %s19, %s31
      %s33 = ssub.s32 %s20, %s27
      %s34 = sor.u32 %s32, %s33
      %p35 = scmp.eq.s32.totalorder %s34, 0
      %s37 = sadd.s32 %s36, 1
      %s38 = scalar_select %p35, %s36, %s37
      %p41 = pneg %p35
      %p42 = scmp.eq.s32.totalorder %s12, 1
      %p43 = por %p41, %p42
      %p44 = scmp.ne.s32.totalorder %s36, %s39
      %p45 = scmp.eq.s32.totalorder %s12, 0
      %p46 = por %p44, %p45
      %p47 = scmp.ne.s32.totalorder %s36, %s39
      %p48 = scmp.eq.s32.totalorder %s17, 1
      %p49 = por %p47, %p48
      %p50 = scmp.ne.s32.totalorder %s39, %s40
      %p51 = scmp.eq.s32.totalorder %s17, 0
      %p52 = por %p50, %p51
      %p53 = scmp.ne.s32.totalorder %s39, %s40
      %p54 = scmp.eq.s32.totalorder %s18, 1
      %p55 = por %p53, %p54
      %p57 = scmp.ne.s32.totalorder %s40, %s56
      %p58 = scmp.eq.s32.totalorder %s18, 0
      %p59 = por %p57, %p58
      %s60 = ssub.s32 %s19, %s31
      %s61 = ssub.s32 %s20, %s27
      %s62 = sor.u32 %s60, %s61
      %p63 = scmp.eq.s32.totalorder %s62, 0
      %s65 = sadd.s32 %s64, 1
      %s66 = scalar_select %p63, %s64, %s65
      %p69 = pneg %p63
      %p70 = scmp.eq.s32.totalorder %s12, 1
      %p71 = por %p69, %p70
      %p72 = scmp.ne.s32.totalorder %s64, %s67
      %p73 = scmp.eq.s32.totalorder %s12, 0
      %p74 = por %p72, %p73
      %p75 = scmp.ne.s32.totalorder %s64, %s67
      %p76 = scmp.eq.s32.totalorder %s17, 1
      %p77 = por %p75, %p76
      %p78 = scmp.ne.s32.totalorder %s67, %s68
      %p79 = scmp.eq.s32.totalorder %s17, 0
      %p80 = por %p78, %p79
      %p81 = scmp.ne.s32.totalorder %s67, %s68
      %p82 = scmp.eq.s32.totalorder %s18, 1
      %p83 = por %p81, %p82
      %p85 = scmp.ne.s32.totalorder %s68, %s84
      %p86 = scmp.eq.s32.totalorder %s18, 0
      %p87 = por %p85, %p86
      %s89 = sadd.s32 %s88, 1
      %p92 = scmp.eq.s32.totalorder %s12, 1
      %p93 = scmp.ne.s32.totalorder %s88, %s90
      %p94 = scmp.eq.s32.totalorder %s12, 0
      %p95 = por %p93, %p94
      %p96 = scmp.ne.s32.totalorder %s88, %s90
      %p97 = scmp.eq.s32.totalorder %s17, 1
      %p98 = por %p96, %p97
      %p99 = scmp.ne.s32.totalorder %s90, %s91
      %p100 = scmp.eq.s32.totalorder %s17, 0
      %p101 = por %p99, %p100
      %p102 = scmp.ne.s32.totalorder %s90, %s91
      %p103 = scmp.eq.s32.totalorder %s18, 1
      %p104 = por %p102, %p103
      %p106 = scmp.ne.s32.totalorder %s91, %s105
      %p107 = scmp.eq.s32.totalorder %s18, 0
      %p108 = por %p106, %p107
      %s109 = ssub.s32 %s19, %s31
      %s110 = ssub.s32 %s20, %s27
      %s111 = sor.u32 %s109, %s110
      %p112 = scmp.eq.s32.totalorder %s111, 0
      %s114 = sadd.s32 %s113, 1
      %s115 = scalar_select %p112, %s113, %s114
      %p118 = pneg %p112
      %p119 = scmp.eq.s32.totalorder %s12, 1
      %p120 = por %p118, %p119
      %p121 = scmp.ne.s32.totalorder %s113, %s116
      %p122 = scmp.eq.s32.totalorder %s12, 0
      %p123 = por %p121, %p122
      %p124 = scmp.ne.s32.totalorder %s113, %s116
      %p125 = scmp.eq.s32.totalorder %s17, 1
      %p126 = por %p124, %p125
      %p127 = scmp.ne.s32.totalorder %s116, %s117
      %p128 = scmp.eq.s32.totalorder %s17, 0
      %p129 = por %p127, %p128
      %p130 = scmp.ne.s32.totalorder %s116, %s117
      %p131 = scmp.eq.s32.totalorder %s18, 1
      %p132 = por %p130, %p131
      %p134 = scmp.ne.s32.totalorder %s117, %s133
      %p135 = scmp.eq.s32.totalorder %s18, 0
      %p136 = por %p134, %p135
      %p137 = scmp.le.s32.totalorder 1, %s12
      %p138 = scmp.lt.s32.totalorder %s12, 3
      %p139 = pnand %p137, %p138
      %p140 = pneg %p139
      // Predicated region
      $region9: #{tpu_custom_call.1} parent=5 // pred_check
        _
      $region10: #{tpu_custom_call.1} parent=5 // pred_check_branch
        %142 = sbr.rel (%p139) target = $region12
      $region11: #{tpu_custom_call.1} parent=5 // pred_region
        %s143 = ssub.s32 %s12, 1
        // Predicated region
        $region13: #{tpu_custom_call.1} parent=11 // pred_check
          %p144 = pneg %p101
        $region14: #{tpu_custom_call.1} parent=11 // pred_check_branch
          %146 = sbr.rel (%p144) target = $region16
        $region15: #{tpu_custom_call.1} parent=11 // pred_region
          _
        $region16: #{tpu_custom_call.1} parent=11 // pred_fallthru
          _
      $region12: #{tpu_custom_call.1} parent=5 // pred_fallthru
        _
      %p147 = scmp.lt.s32.totalorder %s12, 2
      // Predicated region
      $region17: #{tpu_custom_call.1} parent=5 // pred_check
        %p148 = pneg %p147
      $region18: #{tpu_custom_call.1} parent=5 // pred_check_branch
        %150 = sbr.rel (%p148) target = $region20
      $region19: #{tpu_custom_call.1} parent=5 // pred_region
        // Predicated region
        $region21: #{tpu_custom_call.1} parent=19 // pred_check
          %p151 = pneg %p46
        $region22: #{tpu_custom_call.1} parent=19 // pred_check_branch
          %153 = sbr.rel (%p151) target = $region24
        $region23: #{tpu_custom_call.1} parent=19 // pred_region
          %s154 = smul.u32 2, %s20
          %p155 = scmp.lt.s32.totalorder %s19, 1
          %s156 = scalar_select %p155, %s19, 1
          %p157 = scmp.lt.s32.totalorder %s154, 1
          %s158 = scalar_select %p157, %s154, 1
          %s159 = smul.addr %s156, 4
          %s160 = sadd.s32 %s158, %s159
          %s161 = smul.addr %s160, 8
          %s162 = scalar_lea.vmem %s0, %s161
          %s163 = smul.u32 2, %s20
        $region24: #{tpu_custom_call.1} parent=19 // pred_fallthru
          _
        // Predicated region
        $region25: #{tpu_custom_call.1} parent=19 // pred_check
          %p164 = pneg %p74
        $region26: #{tpu_custom_call.1} parent=19 // pred_check_branch
          %166 = sbr.rel (%p164) target = $region28
        $region27: #{tpu_custom_call.1} parent=19 // pred_region
          %s167 = smul.u32 2, %s20
          %p168 = scmp.lt.s32.totalorder %s19, 1
          %s169 = scalar_select %p168, %s19, 1
          %p170 = scmp.lt.s32.totalorder %s167, 1
          %s171 = scalar_select %p170, %s167, 1
          %s172 = smul.addr %s169, 4
          %s173 = sadd.s32 %s171, %s172
          %s174 = smul.addr %s173, 8
          %s175 = scalar_lea.vmem %s1, %s174
          %s176 = smul.u32 2, %s20
        $region28: #{tpu_custom_call.1} parent=19 // pred_fallthru
          _
      $region20: #{tpu_custom_call.1} parent=5 // pred_fallthru
        _
      %p177 = scmp.le.s32.totalorder 1, %s12
      %p178 = scmp.lt.s32.totalorder %s12, 3
      %p179 = pnand %p177, %p178
      %p180 = pneg %p179
      // Predicated region
      $region29: #{tpu_custom_call.1} parent=5 // pred_check
        _
      $region30: #{tpu_custom_call.1} parent=5 // pred_check_branch
        %182 = sbr.rel (%p179) target = $region32
      $region31: #{tpu_custom_call.1} parent=5 // pred_region
        %s183 = ssub.s32 %s12, 1
        %s184 = smul.u32 2, %s22
        %p185 = scmp.lt.s32.totalorder %s21, 1
        %s186 = scalar_select %p185, %s21, 1
        %p187 = scmp.lt.s32.totalorder %s184, 1
        %s188 = scalar_select %p187, %s184, 1
        %s189 = smul.addr %s186, 4
        %s190 = sadd.s32 %s188, %s189
        %s191 = smul.addr %s190, 8
        %s192 = scalar_lea.vmem %s0, %s191
        %p193 = pneg %p52
        %p194 = pneg %p49
        %s195 = smul.u32 2, %s22
        %p196 = scmp.lt.s32.totalorder %s21, 1
        %s197 = scalar_select %p196, %s21, 1
        %p198 = scmp.lt.s32.totalorder %s195, 1
        %s199 = scalar_select %p198, %s195, 1
        %s200 = smul.addr %s197, 4
        %s201 = sadd.s32 %s199, %s200
        %s202 = smul.addr %s201, 8
        %s203 = scalar_lea.vmem %s1, %s202
        %p204 = pneg %p80
        %p205 = pneg %p77
        %p206 = pneg %p101
        %p207 = pneg %p98
        %p208 = pneg %p129
        %p209 = pneg %p126
        %s210 = sand.u32 %s116, 1
        %s211 = scalar_lea.sflag [#allocation3], %s210
        %s212 = sand.u32 %s116, 1
        %s213 = smul.addr %s212, 512
        %s214 = scalar_lea.vmem [#allocation2], %s213
        %s215 = smul.u32 2, %s22
        %p216 = scmp.lt.s32.totalorder %s21, 1
        %s217 = scalar_select %p216, %s21, 1
        %p218 = scmp.lt.s32.totalorder %s215, 1
        %s219 = scalar_select %p218, %s215, 1
        %s220 = smul.addr %s217, 4
        %s221 = sadd.s32 %s219, %s220
        %s222 = smul.addr %s221, 8
        %s223 = scalar_lea.vmem %s0, %s222
        %s224 = smul.u32 2, %s22
        %s225 = smul.u32 2, %s22
        %p226 = scmp.lt.s32.totalorder %s21, 1
        %s227 = scalar_select %p226, %s21, 1
        %p228 = scmp.lt.s32.totalorder %s225, 1
        %s229 = scalar_select %p228, %s225, 1
        %s230 = smul.addr %s227, 4
        %s231 = sadd.s32 %s229, %s230
        %s232 = smul.addr %s231, 8
        %s233 = scalar_lea.vmem %s1, %s232
        %s234 = smul.u32 2, %s22
        %s235 = smul.u32 2, %s22
        %v236 = vld [vmem:[%s223] sm:$0xff]
        %v237 = vld [vmem:[%s223 + $0x8] sm:$0xff]
        %v238 = vld [vmem:[%s223 + $0x10] sm:$0xff]
        %v239 = vld [vmem:[%s223 + $0x18] sm:$0xff]
        %v240 = vld [vmem:[%s233] sm:$0xff]
        %v241 = vld [vmem:[%s233 + $0x8] sm:$0xff]
        %v242 = vld [vmem:[%s233 + $0x10] sm:$0xff]
        %v243 = vld [vmem:[%s233 + $0x18] sm:$0xff]
        %v244 = vld [vmem:[%s2] sm:$0xff]
        %v245 = vld [vmem:[%s2 + $0x8] sm:$0xff]
        %v246 = vld [vmem:[%s2 + $0x10] sm:$0xff]
        %v247 = vld [vmem:[%s2 + $0x18] sm:$0xff]
        %v248 = vld [vmem:[%s2 + $0x20] sm:$0xff]
        %v249 = vld [vmem:[%s2 + $0x28] sm:$0xff]
        %v250 = vld [vmem:[%s2 + $0x30] sm:$0xff]
        %v251 = vld [vmem:[%s2 + $0x38] sm:$0xff]
        %v252 = vld [vmem:[%s2 + $0x40] sm:$0xff]
        %v253 = vld [vmem:[%s2 + $0x48] sm:$0xff]
        %v254 = vld [vmem:[%s2 + $0x50] sm:$0xff]
        %v255 = vld [vmem:[%s2 + $0x58] sm:$0xff]
        %v256 = vld [vmem:[%s2 + $0x60] sm:$0xff]
        %v257 = vld [vmem:[%s2 + $0x68] sm:$0xff]
        %v258 = vld [vmem:[%s2 + $0x70] sm:$0xff]
        %v259 = vld [vmem:[%s2 + $0x78] sm:$0xff]
        %v260 = vld [vmem:[%s2 + $0x80] sm:$0xff]
        %v261 = vld [vmem:[%s2 + $0x88] sm:$0xff]
        %v262 = vld [vmem:[%s2 + $0x90] sm:$0xff]
        %v263 = vld [vmem:[%s2 + $0x98] sm:$0xff]
        %v264 = vld [vmem:[%s2 + $0xa0] sm:$0xff]
        %v265 = vld [vmem:[%s2 + $0xa8] sm:$0xff]
        %v266 = vld [vmem:[%s2 + $0xb0] sm:$0xff]
        %v267 = vld [vmem:[%s2 + $0xb8] sm:$0xff]
        %v268 = vld [vmem:[%s2 + $0xc0] sm:$0xff]
        %v269 = vld [vmem:[%s2 + $0xc8] sm:$0xff]
        %v270 = vld [vmem:[%s2 + $0xd0] sm:$0xff]
        %v271 = vld [vmem:[%s2 + $0xd8] sm:$0xff]
        %v272 = vld [vmem:[%s2 + $0xe0] sm:$0xff]
        %v273 = vld [vmem:[%s2 + $0xe8] sm:$0xff]
        %v274 = vld [vmem:[%s2 + $0xf0] sm:$0xff]
        %v275 = vld [vmem:[%s2 + $0xf8] sm:$0xff]
        %vm276 = vcmask 261120
        %v278 = vsel %vm276, %v244, 0
        %v281 = vsel %vm276, %v245, 0
        %v284 = vsel %vm276, %v246, 0
        %v287 = vsel %vm276, %v247, 0
        %v290 = vsel %vm276, %v248, 0
        %v293 = vsel %vm276, %v249, 0
        %v296 = vsel %vm276, %v250, 0
        %v299 = vsel %vm276, %v251, 0
        %v302 = vsel %vm276, %v252, 0
        %v305 = vsel %vm276, %v253, 0
        %v308 = vsel %vm276, %v254, 0
        %v311 = vsel %vm276, %v255, 0
        %v314 = vsel %vm276, %v256, 0
        %v317 = vsel %vm276, %v257, 0
        %v320 = vsel %vm276, %v258, 0
        %v323 = vsel %vm276, %v259, 0
        %v326 = vsel %vm276, %v260, 0
        %v329 = vsel %vm276, %v261, 0
        %v332 = vsel %vm276, %v262, 0
        %v335 = vsel %vm276, %v263, 0
        %v338 = vsel %vm276, %v264, 0
        %v341 = vsel %vm276, %v265, 0
        %v344 = vsel %vm276, %v266, 0
        %v347 = vsel %vm276, %v267, 0
        %v350 = vsel %vm276, %v268, 0
        %v353 = vsel %vm276, %v269, 0
        %v356 = vsel %vm276, %v270, 0
        %v359 = vsel %vm276, %v271, 0
        %v362 = vsel %vm276, %v272, 0
        %v365 = vsel %vm276, %v273, 0
        %v368 = vsel %vm276, %v274, 0
        %v371 = vsel %vm276, %v275, 0
        %373 = vmatprep.subr.mxu0 0.0
        %374 = vmatpush1.msra.mxu0 0.0
        %375 = vmatprep.subr.mxu0 0.0
        %376 = vmatpush1.msra.mxu0 0.0
        %377 = vmatprep.subr.mxu0 0.0
        %378 = vmatpush1.msra.mxu0 0.0
        %379 = vmatprep.subr.mxu0 0.0
        %380 = vmatpush1.msra.mxu0 0.0
        %381 = vmatprep.subr.mxu0 0.0
        %382 = vmatpush1.msra.mxu0 0.0
        %383 = vmatprep.subr.mxu0 0.0
        %384 = vmatpush1.msra.mxu0 0.0
        %385 = vmatprep.subr.mxu0 0.0
        %386 = vmatpush1.msra.mxu0 0.0
        %387 = vmatprep.subr.mxu0 0.0
        %388 = vmatpush1.msra.mxu0 0.0
        %389 = vmatprep.subr.mxu0 0.0
        %390 = vmatpush1.msra.mxu0 0.0
        %391 = vmatprep.subr.mxu0 0.0
        %392 = vmatpush1.msra.mxu0 0.0
        %393 = vmatprep.subr.mxu0 0.0
        %394 = vmatpush1.msra.mxu0 0.0
        %395 = vmatprep.subr.mxu0 0.0
        %396 = vmatpush1.msra.mxu0 0.0
        %397 = vmatprep.subr.mxu0 %v243
        %398 = vmatpush1.msra.mxu0 %v242
        %399 = vmatprep.subr.mxu0 %v241
        %400 = vmatpush1.msra.mxu0 %v240
        %401 = vmatprep.subr.mxu0 %v239
        %402 = vmatpush1.msra.mxu0 %v238
        %403 = vmatprep.subr.mxu0 %v237
        %404 = vmatpush1.msra.mxu0 %v236
        %405 = vmatprep.subr.mxu0 0.0
        %406 = vmatpush2.msra.mxu0 0.0
        %407 = vmatprep.subr.mxu0 0.0
        %408 = vmatpush2.msra.mxu0 0.0
        %409 = vmatprep.subr.mxu0 0.0
        %410 = vmatpush2.msra.mxu0 0.0
        %411 = vmatprep.subr.mxu0 0.0
        %412 = vmatpush2.msra.mxu0 0.0
        %413 = vmatprep.subr.mxu0 0.0
        %414 = vmatpush2.msra.mxu0 0.0
        %415 = vmatprep.subr.mxu0 0.0
        %416 = vmatpush2.msra.mxu0 0.0
        %417 = vmatprep.subr.mxu0 0.0
        %418 = vmatpush2.msra.mxu0 0.0
        %419 = vmatprep.subr.mxu0 0.0
        %420 = vmatpush2.msra.mxu0 0.0
        %421 = vmatprep.subr.mxu0 0.0
        %422 = vmatpush2.msra.mxu0 0.0
        %423 = vmatprep.subr.mxu0 0.0
        %424 = vmatpush2.msra.mxu0 0.0
        %425 = vmatprep.subr.mxu0 0.0
        %426 = vmatpush2.msra.mxu0 0.0
        %427 = vmatprep.subr.mxu0 0.0
        %428 = vmatpush2.msra.mxu0 0.0
        %429 = vmatprep.subr.mxu0 0.0
        %430 = vmatpush2.msra.mxu0 0.0
        %431 = vmatprep.subr.mxu0 0.0
        %432 = vmatpush2.msra.mxu0 0.0
        %433 = vmatprep.subr.mxu0 0.0
        %434 = vmatpush2.msra.mxu0 0.0
        %435 = vmatprep.subr.mxu0 0.0
        %436 = vmatpush2.msra.mxu0 0.0
        %437 = vmatprep.mubr.f32.mxu0 0.0
        %438 = vmatmul.mubr.f32.gmra.mxu0 %v278
        %v439 = vpop.f32.mrf.mxu0
        %v440 = vadd.f32 0.0, %v439
        %v441 = vpop.f32.mrf.mxu0
        %v442 = vadd.f32 0.0, %v441
        %443 = vmatprep.mubr.f32.mxu0 0.0
        %444 = vmatmul.mubr.f32.gmra.mxu0 %v281
        %v445 = vpop.f32.mrf.mxu0
        %v446 = vadd.f32 0.0, %v445
        %v447 = vpop.f32.mrf.mxu0
        %v448 = vadd.f32 0.0, %v447
        %449 = vmatprep.mubr.f32.mxu0 0.0
        %450 = vmatmul.mubr.f32.gmra.mxu0 %v284
        %v451 = vpop.f32.mrf.mxu0
        %v452 = vadd.f32 0.0, %v451
        %v453 = vpop.f32.mrf.mxu0
        %v454 = vadd.f32 0.0, %v453
        %455 = vmatprep.mubr.f32.mxu0 0.0
        %456 = vmatmul.mubr.f32.gmra.mxu0 %v287
        %v457 = vpop.f32.mrf.mxu0
        %v458 = vadd.f32 0.0, %v457
        %v459 = vpop.f32.mrf.mxu0
        %v460 = vadd.f32 0.0, %v459
        %461 = vmatprep.mubr.f32.mxu0 0.0
        %462 = vmatmul.mubr.f32.gmra.mxu0 %v290
        %v463 = vpop.f32.mrf.mxu0
        %v464 = vadd.f32 0.0, %v463
        %v465 = vpop.f32.mrf.mxu0
        %v466 = vadd.f32 0.0, %v465
        %467 = vmatprep.mubr.f32.mxu0 0.0
        %468 = vmatmul.mubr.f32.gmra.mxu0 %v293
        %v469 = vpop.f32.mrf.mxu0
        %v470 = vadd.f32 0.0, %v469
        %v471 = vpop.f32.mrf.mxu0
        %v472 = vadd.f32 0.0, %v471
        %473 = vmatprep.mubr.f32.mxu0 0.0
        %474 = vmatmul.mubr.f32.gmra.mxu0 %v296
        %v475 = vpop.f32.mrf.mxu0
        %v476 = vadd.f32 0.0, %v475
        %v477 = vpop.f32.mrf.mxu0
        %v478 = vadd.f32 0.0, %v477
        %479 = vmatprep.mubr.f32.mxu0 0.0
        %480 = vmatmul.mubr.f32.gmra.mxu0 %v299
        %v481 = vpop.f32.mrf.mxu0
        %v482 = vadd.f32 0.0, %v481
        %v483 = vpop.f32.mrf.mxu0
        %v484 = vadd.f32 0.0, %v483
        %485 = vmatprep.mubr.f32.mxu0 0.0
        %486 = vmatmul.mubr.f32.gmra.mxu0 %v302
        %v487 = vpop.f32.mrf.mxu0
        %v488 = vadd.f32 0.0, %v487
        %v489 = vpop.f32.mrf.mxu0
        %v490 = vadd.f32 0.0, %v489
        %491 = vmatprep.mubr.f32.mxu0 0.0
        %492 = vmatmul.mubr.f32.gmra.mxu0 %v305
        %v493 = vpop.f32.mrf.mxu0
        %v494 = vadd.f32 0.0, %v493
        %v495 = vpop.f32.mrf.mxu0
        %v496 = vadd.f32 0.0, %v495
        %497 = vmatprep.mubr.f32.mxu0 0.0
        %498 = vmatmul.mubr.f32.gmra.mxu0 %v308
        %v499 = vpop.f32.mrf.mxu0
        %v500 = vadd.f32 0.0, %v499
        %v501 = vpop.f32.mrf.mxu0
        %v502 = vadd.f32 0.0, %v501
        %503 = vmatprep.mubr.f32.mxu0 0.0
        %504 = vmatmul.mubr.f32.gmra.mxu0 %v311
        %v505 = vpop.f32.mrf.mxu0
        %v506 = vadd.f32 0.0, %v505
        %v507 = vpop.f32.mrf.mxu0
        %v508 = vadd.f32 0.0, %v507
        %509 = vmatprep.mubr.f32.mxu0 0.0
        %510 = vmatmul.mubr.f32.gmra.mxu0 %v314
        %v511 = vpop.f32.mrf.mxu0
        %v512 = vadd.f32 0.0, %v511
        %v513 = vpop.f32.mrf.mxu0
        %v514 = vadd.f32 0.0, %v513
        %515 = vmatprep.mubr.f32.mxu0 0.0
        %516 = vmatmul.mubr.f32.gmra.mxu0 %v317
        %v517 = vpop.f32.mrf.mxu0
        %v518 = vadd.f32 0.0, %v517
        %v519 = vpop.f32.mrf.mxu0
        %v520 = vadd.f32 0.0, %v519
        %521 = vmatprep.mubr.f32.mxu0 0.0
        %522 = vmatmul.mubr.f32.gmra.mxu0 %v320
        %v523 = vpop.f32.mrf.mxu0
        %v524 = vadd.f32 0.0, %v523
        %v525 = vpop.f32.mrf.mxu0
        %v526 = vadd.f32 0.0, %v525
        %527 = vmatprep.mubr.f32.mxu0 0.0
        %528 = vmatmul.mubr.f32.gmra.mxu0 %v323
        %v529 = vpop.f32.mrf.mxu0
        %v530 = vadd.f32 0.0, %v529
        %v531 = vpop.f32.mrf.mxu0
        %v532 = vadd.f32 0.0, %v531
        %533 = vmatprep.mubr.f32.mxu0 0.0
        %534 = vmatmul.mubr.f32.gmra.mxu0 %v326
        %v535 = vpop.f32.mrf.mxu0
        %v536 = vadd.f32 0.0, %v535
        %v537 = vpop.f32.mrf.mxu0
        %v538 = vadd.f32 0.0, %v537
        %539 = vmatprep.mubr.f32.mxu0 0.0
        %540 = vmatmul.mubr.f32.gmra.mxu0 %v329
        %v541 = vpop.f32.mrf.mxu0
        %v542 = vadd.f32 0.0, %v541
        %v543 = vpop.f32.mrf.mxu0
        %v544 = vadd.f32 0.0, %v543
        %545 = vmatprep.mubr.f32.mxu0 0.0
        %546 = vmatmul.mubr.f32.gmra.mxu0 %v332
        %v547 = vpop.f32.mrf.mxu0
        %v548 = vadd.f32 0.0, %v547
        %v549 = vpop.f32.mrf.mxu0
        %v550 = vadd.f32 0.0, %v549
        %551 = vmatprep.mubr.f32.mxu0 0.0
        %552 = vmatmul.mubr.f32.gmra.mxu0 %v335
        %v553 = vpop.f32.mrf.mxu0
        %v554 = vadd.f32 0.0, %v553
        %v555 = vpop.f32.mrf.mxu0
        %v556 = vadd.f32 0.0, %v555
        %557 = vmatprep.mubr.f32.mxu0 0.0
        %558 = vmatmul.mubr.f32.gmra.mxu0 %v338
        %v559 = vpop.f32.mrf.mxu0
        %v560 = vadd.f32 0.0, %v559
        %v561 = vpop.f32.mrf.mxu0
        %v562 = vadd.f32 0.0, %v561
        %563 = vmatprep.mubr.f32.mxu0 0.0
        %564 = vmatmul.mubr.f32.gmra.mxu0 %v341
        %v565 = vpop.f32.mrf.mxu0
        %v566 = vadd.f32 0.0, %v565
        %v567 = vpop.f32.mrf.mxu0
        %v568 = vadd.f32 0.0, %v567
        %569 = vmatprep.mubr.f32.mxu0 0.0
        %570 = vmatmul.mubr.f32.gmra.mxu0 %v344
        %v571 = vpop.f32.mrf.mxu0
        %v572 = vadd.f32 0.0, %v571
        %v573 = vpop.f32.mrf.mxu0
        %v574 = vadd.f32 0.0, %v573
        %575 = vmatprep.mubr.f32.mxu0 0.0
        %576 = vmatmul.mubr.f32.gmra.mxu0 %v347
        %v577 = vpop.f32.mrf.mxu0
        %v578 = vadd.f32 0.0, %v577
        %v579 = vpop.f32.mrf.mxu0
        %v580 = vadd.f32 0.0, %v579
        %581 = vmatprep.mubr.f32.mxu0 0.0
        %582 = vmatmul.mubr.f32.gmra.mxu0 %v350
        %v583 = vpop.f32.mrf.mxu0
        %v584 = vadd.f32 0.0, %v583
        %v585 = vpop.f32.mrf.mxu0
        %v586 = vadd.f32 0.0, %v585
        %587 = vmatprep.mubr.f32.mxu0 0.0
        %588 = vmatmul.mubr.f32.gmra.mxu0 %v353
        %v589 = vpop.f32.mrf.mxu0
        %v590 = vadd.f32 0.0, %v589
        %v591 = vpop.f32.mrf.mxu0
        %v592 = vadd.f32 0.0, %v591
        %593 = vmatprep.mubr.f32.mxu0 0.0
        %594 = vmatmul.mubr.f32.gmra.mxu0 %v356
        %v595 = vpop.f32.mrf.mxu0
        %v596 = vadd.f32 0.0, %v595
        %v597 = vpop.f32.mrf.mxu0
        %v598 = vadd.f32 0.0, %v597
        %599 = vmatprep.mubr.f32.mxu0 0.0
        %600 = vmatmul.mubr.f32.gmra.mxu0 %v359
        %v601 = vpop.f32.mrf.mxu0
        %v602 = vadd.f32 0.0, %v601
        %v603 = vpop.f32.mrf.mxu0
        %v604 = vadd.f32 0.0, %v603
        %605 = vmatprep.mubr.f32.mxu0 0.0
        %606 = vmatmul.mubr.f32.gmra.mxu0 %v362
        %v607 = vpop.f32.mrf.mxu0
        %v608 = vadd.f32 0.0, %v607
        %v609 = vpop.f32.mrf.mxu0
        %v610 = vadd.f32 0.0, %v609
        %611 = vmatprep.mubr.f32.mxu0 0.0
        %612 = vmatmul.mubr.f32.gmra.mxu0 %v365
        %v613 = vpop.f32.mrf.mxu0
        %v614 = vadd.f32 0.0, %v613
        %v615 = vpop.f32.mrf.mxu0
        %v616 = vadd.f32 0.0, %v615
        %617 = vmatprep.mubr.f32.mxu0 0.0
        %618 = vmatmul.mubr.f32.gmra.mxu0 %v368
        %v619 = vpop.f32.mrf.mxu0
        %v620 = vadd.f32 0.0, %v619
        %v621 = vpop.f32.mrf.mxu0
        %v622 = vadd.f32 0.0, %v621
        %623 = vmatprep.mubr.f32.mxu0 0.0
        %624 = vmatmul.mubr.f32.gmra.mxu0 %v371
        %v625 = vpop.f32.mrf.mxu0
        %v626 = vadd.f32 0.0, %v625
        %v627 = vpop.f32.mrf.mxu0
        %v628 = vadd.f32 0.0, %v627
        %629 = vdwg.mxu0
        %v630 = vmax.f32 %v440, 0.0
        %v631 = vmax.f32 %v442, 0.0
        %v632 = vmax.f32 %v446, 0.0
        %v633 = vmax.f32 %v448, 0.0
        %v634 = vmax.f32 %v452, 0.0
        %v635 = vmax.f32 %v454, 0.0
        %v636 = vmax.f32 %v458, 0.0
        %v637 = vmax.f32 %v460, 0.0
        %v638 = vmax.f32 %v464, 0.0
        %v639 = vmax.f32 %v466, 0.0
        %v640 = vmax.f32 %v470, 0.0
        %v641 = vmax.f32 %v472, 0.0
        %v642 = vmax.f32 %v476, 0.0
        %v643 = vmax.f32 %v478, 0.0
        %v644 = vmax.f32 %v482, 0.0
        %v645 = vmax.f32 %v484, 0.0
        %v646 = vmax.f32 %v488, 0.0
        %v647 = vmax.f32 %v490, 0.0
        %v648 = vmax.f32 %v494, 0.0
        %v649 = vmax.f32 %v496, 0.0
        %v650 = vmax.f32 %v500, 0.0
        %v651 = vmax.f32 %v502, 0.0
        %v652 = vmax.f32 %v506, 0.0
        %v653 = vmax.f32 %v508, 0.0
        %v654 = vmax.f32 %v512, 0.0
        %v655 = vmax.f32 %v514, 0.0
        %v656 = vmax.f32 %v518, 0.0
        %v657 = vmax.f32 %v520, 0.0
        %v658 = vmax.f32 %v524, 0.0
        %v659 = vmax.f32 %v526, 0.0
        %v660 = vmax.f32 %v530, 0.0
        %v661 = vmax.f32 %v532, 0.0
        %v662 = vmax.f32 %v536, 0.0
        %v663 = vmax.f32 %v538, 0.0
        %v664 = vmax.f32 %v542, 0.0
        %v665 = vmax.f32 %v544, 0.0
        %v666 = vmax.f32 %v548, 0.0
        %v667 = vmax.f32 %v550, 0.0
        %v668 = vmax.f32 %v554, 0.0
        %v669 = vmax.f32 %v556, 0.0
        %v670 = vmax.f32 %v560, 0.0
        %v671 = vmax.f32 %v562, 0.0
        %v672 = vmax.f32 %v566, 0.0
        %v673 = vmax.f32 %v568, 0.0
        %v674 = vmax.f32 %v572, 0.0
        %v675 = vmax.f32 %v574, 0.0
        %v676 = vmax.f32 %v578, 0.0
        %v677 = vmax.f32 %v580, 0.0
        %v678 = vmax.f32 %v584, 0.0
        %v679 = vmax.f32 %v586, 0.0
        %v680 = vmax.f32 %v590, 0.0
        %v681 = vmax.f32 %v592, 0.0
        %v682 = vmax.f32 %v596, 0.0
        %v683 = vmax.f32 %v598, 0.0
        %v684 = vmax.f32 %v602, 0.0
        %v685 = vmax.f32 %v604, 0.0
        %v686 = vmax.f32 %v608, 0.0
        %v687 = vmax.f32 %v610, 0.0
        %v688 = vmax.f32 %v614, 0.0
        %v689 = vmax.f32 %v616, 0.0
        %v690 = vmax.f32 %v620, 0.0
        %v691 = vmax.f32 %v622, 0.0
        %v692 = vmax.f32 %v626, 0.0
        %v693 = vmax.f32 %v628, 0.0
        %694 = vst [vmem:[%s214] sm:$0xff] %v630
        %695 = vst [vmem:[%s214 + $0x8] sm:$0xff] %v631
        %696 = vst [vmem:[%s214 + $0x10] sm:$0xff] %v632
        %697 = vst [vmem:[%s214 + $0x18] sm:$0xff] %v633
        %698 = vst [vmem:[%s214 + $0x20] sm:$0xff] %v634
        %699 = vst [vmem:[%s214 + $0x28] sm:$0xff] %v635
        %700 = vst [vmem:[%s214 + $0x30] sm:$0xff] %v636
        %701 = vst [vmem:[%s214 + $0x38] sm:$0xff] %v637
        %702 = vst [vmem:[%s214 + $0x40] sm:$0xff] %v638
        %703 = vst [vmem:[%s214 + $0x48] sm:$0xff] %v639
        %704 = vst [vmem:[%s214 + $0x50] sm:$0xff] %v640
        %705 = vst [vmem:[%s214 + $0x58] sm:$0xff] %v641
        %706 = vst [vmem:[%s214 + $0x60] sm:$0xff] %v642
        %707 = vst [vmem:[%s214 + $0x68] sm:$0xff] %v643
        %708 = vst [vmem:[%s214 + $0x70] sm:$0xff] %v644
        %709 = vst [vmem:[%s214 + $0x78] sm:$0xff] %v645
        %710 = vst [vmem:[%s214 + $0x80] sm:$0xff] %v646
        %711 = vst [vmem:[%s214 + $0x88] sm:$0xff] %v647
        %712 = vst [vmem:[%s214 + $0x90] sm:$0xff] %v648
        %713 = vst [vmem:[%s214 + $0x98] sm:$0xff] %v649
        %714 = vst [vmem:[%s214 + $0xa0] sm:$0xff] %v650
        %715 = vst [vmem:[%s214 + $0xa8] sm:$0xff] %v651
        %716 = vst [vmem:[%s214 + $0xb0] sm:$0xff] %v652
        %717 = vst [vmem:[%s214 + $0xb8] sm:$0xff] %v653
        %718 = vst [vmem:[%s214 + $0xc0] sm:$0xff] %v654
        %719 = vst [vmem:[%s214 + $0xc8] sm:$0xff] %v655
        %720 = vst [vmem:[%s214 + $0xd0] sm:$0xff] %v656
        %721 = vst [vmem:[%s214 + $0xd8] sm:$0xff] %v657
        %722 = vst [vmem:[%s214 + $0xe0] sm:$0xff] %v658
        %723 = vst [vmem:[%s214 + $0xe8] sm:$0xff] %v659
        %724 = vst [vmem:[%s214 + $0xf0] sm:$0xff] %v660
        %725 = vst [vmem:[%s214 + $0xf8] sm:$0xff] %v661
        %726 = vst [vmem:[%s214 + $0x100] sm:$0xff] %v662
        %727 = vst [vmem:[%s214 + $0x108] sm:$0xff] %v663
        %728 = vst [vmem:[%s214 + $0x110] sm:$0xff] %v664
        %729 = vst [vmem:[%s214 + $0x118] sm:$0xff] %v665
        %730 = vst [vmem:[%s214 + $0x120] sm:$0xff] %v666
        %731 = vst [vmem:[%s214 + $0x128] sm:$0xff] %v667
        %732 = vst [vmem:[%s214 + $0x130] sm:$0xff] %v668
        %733 = vst [vmem:[%s214 + $0x138] sm:$0xff] %v669
        %734 = vst [vmem:[%s214 + $0x140] sm:$0xff] %v670
        %735 = vst [vmem:[%s214 + $0x148] sm:$0xff] %v671
        %736 = vst [vmem:[%s214 + $0x150] sm:$0xff] %v672
        %737 = vst [vmem:[%s214 + $0x158] sm:$0xff] %v673
        %738 = vst [vmem:[%s214 + $0x160] sm:$0xff] %v674
        %739 = vst [vmem:[%s214 + $0x168] sm:$0xff] %v675
        %740 = vst [vmem:[%s214 + $0x170] sm:$0xff] %v676
        %741 = vst [vmem:[%s214 + $0x178] sm:$0xff] %v677
        %742 = vst [vmem:[%s214 + $0x180] sm:$0xff] %v678
        %743 = vst [vmem:[%s214 + $0x188] sm:$0xff] %v679
        %744 = vst [vmem:[%s214 + $0x190] sm:$0xff] %v680
        %745 = vst [vmem:[%s214 + $0x198] sm:$0xff] %v681
        %746 = vst [vmem:[%s214 + $0x1a0] sm:$0xff] %v682
        %747 = vst [vmem:[%s214 + $0x1a8] sm:$0xff] %v683
        %748 = vst [vmem:[%s214 + $0x1b0] sm:$0xff] %v684
        %749 = vst [vmem:[%s214 + $0x1b8] sm:$0xff] %v685
        %750 = vst [vmem:[%s214 + $0x1c0] sm:$0xff] %v686
        %751 = vst [vmem:[%s214 + $0x1c8] sm:$0xff] %v687
        %752 = vst [vmem:[%s214 + $0x1d0] sm:$0xff] %v688
        %753 = vst [vmem:[%s214 + $0x1d8] sm:$0xff] %v689
        %754 = vst [vmem:[%s214 + $0x1e0] sm:$0xff] %v690
        %755 = vst [vmem:[%s214 + $0x1e8] sm:$0xff] %v691
        %756 = vst [vmem:[%s214 + $0x1f0] sm:$0xff] %v692
        %757 = vst [vmem:[%s214 + $0x1f8] sm:$0xff] %v693
        %s758 = sand.u32 %s116, 1
        %s759 = scalar_lea.sflag [#allocation3], %s758
        %s760 = sand.u32 %s116, 1
        %s761 = smul.addr %s760, 512
        %s762 = scalar_lea.vmem [#allocation2], %s761
        // Predicated region
        $region33: #{tpu_custom_call.1} parent=31 // pred_check
          %p763 = pneg %p126
        $region34: #{tpu_custom_call.1} parent=31 // pred_check_branch
          %765 = sbr.rel (%p763) target = $region36
        $region35: #{tpu_custom_call.1} parent=31 // pred_region
          %s766 = smul.u32 2, %s22
          %s768 = ssub.s32 8192, 8192
          %769 = vsyncadd %s759, %s768
          %s770 = smul.addr %s21, 64
          %s771 = sadd.s32 %s766, %s770
          %s772 = smul.addr %s771, 128
          %s773 = scalar_lea.hbm %s3, %s772
          %s774 = sshll.u32 %s762, 4
          %s775 = int_to_ptr.vmem [resolvable:$true] %s774
          %780 = dma.vmem_to_hbm [thread:$0]  %s775, 8192, %s773, %s759, 256, 256, 16
        $region36: #{tpu_custom_call.1} parent=31 // pred_fallthru
          _
      $region32: #{tpu_custom_call.1} parent=5 // pred_fallthru
        _
      %p781 = scmp.le.s32.totalorder 2, %s12
      // Predicated region
      $region37: #{tpu_custom_call.1} parent=5 // pred_check
        %p782 = pneg %p781
      $region38: #{tpu_custom_call.1} parent=5 // pred_check_branch
        %784 = sbr.rel (%p782) target = $region40
      $region39: #{tpu_custom_call.1} parent=5 // pred_region
        %s785 = ssub.s32 %s12, 2
        // Predicated region
        $region41: #{tpu_custom_call.1} parent=39 // pred_check
          %p786 = pneg %p132
        $region42: #{tpu_custom_call.1} parent=39 // pred_check_branch
          %788 = sbr.rel (%p786) target = $region44
        $region43: #{tpu_custom_call.1} parent=39 // pred_region
          %s789 = sand.u32 %s117, 1
          %s790 = scalar_lea.sflag [#allocation3], %s789
          %s791 = sand.u32 %s117, 1
          %s792 = smul.addr %s791, 512
          %s793 = scalar_lea.vmem [#allocation2], %s792
          %794 = dma.done %s790, 8192
        $region44: #{tpu_custom_call.1} parent=39 // pred_fallthru
          _
      $region40: #{tpu_custom_call.1} parent=5 // pred_fallthru
        _
    $region6: #{tpu_custom_call.1} parent=1 // loop_footer
      %s16 = sadd.s32 1, %s12
    $region7: #{tpu_custom_call.1} parent=1 // loop_footer_branch
      %11 = sbr.rel target = $region3
    $region8: #{tpu_custom_call.1} parent=1 // loop_exit
      _
    %795 = vsyncpa [#allocation3], 1
    %s796 = scalar_lea.sflag [#allocation3], 1
    %797 = vsyncpa %s796, 1

</llo_original>
